<compile_context>
chip_gen: v5e
topology: v5e:2x2
jax: 0.10.0
libtpu: 0.0.40
codegen_flags: <defaults>
</compile_context>

<pallas_src>
import functools

import jax
import jax.numpy as jnp
import numpy as np
from jax.experimental import pallas as pl
from jax.experimental.pallas import tpu as pltpu

# ----------------------------- "config" ------------------------------------
ENT_DIM = 32      # config.ent_dim
REL_DIM = 32      # config.rel_dim (must equal ent_dim for TransH math)
GAMMA = 12.0      # config.gamma
NORM_P = 2        # config.norm_p


def _lp_norm(x, p, axis=-1):
    # L-p norm over `axis`.
    if p == 1:
        return jnp.sum(jnp.abs(x), axis=axis)
    if p == 2:
        return jnp.sqrt(jnp.sum(x * x, axis=axis))
    return jnp.power(jnp.sum(jnp.power(jnp.abs(x), p), axis=axis), 1.0 / p)


# ----------------------------- Pallas kernel --------------------------------
def _transh_kernel(w_ref, e_ref, r_ref, negT_ref, out_ref, *, head_batch,
                   gamma, p):
    """One (TB, TN) tile of TransH scores, candidates lane-dense.

    Block shapes: w/e/r -> (TB, D); negT -> (TB, D, TN) with the candidate
    axis on lanes; out -> (TB, TN).
      head_batch (e := t): score = neg - (w.neg)w + (r - (t - (w.t)w))
      tail-batch (e := h): score = h - (w.h)w + r - (neg - (w.neg)w)
    """
    w = w_ref[...]        # (TB, D)
    e = e_ref[...]        # (TB, D)
    r = r_ref[...]        # (TB, D)
    negT = negT_ref[...]  # (TB, D, TN)

    # Candidate-independent term, hoisted: computed once per row block
    # (a tiny lane reduction over D).
    wr_e = jnp.sum(w * e, axis=-1, keepdims=True)            # (TB, 1)
    e_proj = e - wr_e * w                                     # (TB, D)
    c = (r - e_proj) if head_batch else (e_proj + r)          # (TB, D)

    wb = w[:, :, None]                                        # (TB, D, 1)
    # D-reduction over the sublane axis (XLU path, lanes stay dense in N).
    wr_neg = jnp.sum(wb * negT, axis=-2, keepdims=True)       # (TB, 1, TN)
    neg_proj = negT - wr_neg * wb                              # (TB, D, TN)

    if head_batch:
        score = neg_proj + c[:, :, None]
    else:
        score = c[:, :, None] - neg_proj

    # Lp-norm over the embedding (sublane) axis; single fused lane-dense write.
    out_ref[...] = _lp_norm(score, p, axis=-2) - gamma         # (TB, TN)


def _choose_tiles(B, N, D):
    """Lane-dense tiling: candidates (N) on lanes, embedding dim (D) on
    sublanes.  Returns (tb, tn, Bp, Np)."""
    # Pad N to a multiple of 128 lanes; tile it with the largest multiple of
    # 128 (<= 512) dividing the padded extent so output stores stay unmasked.
    Np = max(128, ((N + 127) // 128) * 128)
    m = Np // 128
    tn = 128
    for k in (4, 3, 2, 1):
        if m % k == 0:
            tn = 128 * k
            break
    # Batch tile from a conservative per-buffer VMEM budget: the double
    # buffered candidate slab (2 * tb * D * tn * 4B) plus the small per-triple
    # operands must fit v5e's 16 MiB default scoped VMEM and stay well inside
    # v7x's 64 MiB physical VMEM.
    budget = 6 * 1024 * 1024
    tb = max(8, (budget // (D * tn * 4)) // 8 * 8)
    Bp8 = ((B + 7) // 8) * 8
    # For large batches keep >= 4 batch grid steps so the "parallel" axis can
    # be sharded across v7x's two TensorCores and DMA prefetch can overlap.
    if Bp8 >= 32:
        tb = min(tb, max(8, (Bp8 // 4) // 8 * 8))
    tb = min(tb, Bp8)
    # Balance the steps so batch padding stays minimal.
    nsteps = (Bp8 + tb - 1) // tb
    tb = ((Bp8 + nsteps - 1) // nsteps + 7) // 8 * 8
    Bp = ((B + tb - 1) // tb) * tb
    return tb, tn, Bp, Np


def _transh_score(w, e, r, negT, *, head_batch, gamma, p=NORM_P):
    """w/e/r: (B, D) f32; negT: (B, D, N) f32 (lane-dense candidates)
    -> scores (B, N) f32."""
    B, D = w.shape
    N = negT.shape[2]
    tb, tn, Bp, Np = _choose_tiles(B, N, D)
    if Bp != B:
        pad = Bp - B
        w = jnp.pad(w, ((0, pad), (0, 0)))
        e = jnp.pad(e, ((0, pad), (0, 0)))
        r = jnp.pad(r, ((0, pad), (0, 0)))
    if Bp != B or Np != N:
        negT = jnp.pad(negT, ((0, Bp - B), (0, 0), (0, Np - N)))

    kernel = functools.partial(
        _transh_kernel, head_batch=head_batch, gamma=gamma, p=p)
    out = pl.pallas_call(
        kernel,
        out_shape=jax.ShapeDtypeStruct((Bp, Np), jnp.float32),
        grid=(Bp // tb, Np // tn),
        in_specs=[
            pl.BlockSpec((tb, D), lambda b, n: (b, 0)),          # w
            pl.BlockSpec((tb, D), lambda b, n: (b, 0)),          # e (t or h)
            pl.BlockSpec((tb, D), lambda b, n: (b, 0)),          # r
            pl.BlockSpec((tb, D, tn), lambda b, n: (b, 0, n)),   # candidates
        ],
        out_specs=pl.BlockSpec((tb, tn), lambda b, n: (b, n)),
        compiler_params=pltpu.CompilerParams(
            dimension_semantics=("parallel", "parallel"),
            vmem_limit_bytes=32 * 1024 * 1024),
    )(w, e, r, negT)
    return out[:B, :N]


# ----------------------------- parameter init -------------------------------
def _xavier_uniform(key, shape):
    fan_out, fan_in = shape
    bound = float(np.sqrt(6.0 / (fan_in + fan_out)))
    return jax.random.uniform(key, shape, jnp.float32, -bound, bound)


def _max_norm_renorm(w, max_norm=1.0, eps=1e-7):
    # Matches torch nn.Embedding(max_norm=...) row renormalization (forward).
    n = jnp.linalg.norm(w, axis=-1, keepdims=True)
    scale = jnp.where(n > max_norm, max_norm / (n + eps), 1.0)
    return w * scale


def _gather_pos(ent_embd, rel_embd, wr, pos_sample):
    h = ent_embd[pos_sample[:, 0]]                         # (B, D)
    # Renorm only the B gathered relation rows, not the whole table.
    # NOTE: torch persistently renorms the table in place; forward scores match.
    r = _max_norm_renorm(rel_embd[pos_sample[:, 1]], 1.0)  # (B, D)
    t = ent_embd[pos_sample[:, 2]]                         # (B, D)
    w = wr[pos_sample[:, 1]]                               # (B, D)
    return h, r, t, w


@functools.partial(jax.jit, static_argnames=("mode", "gamma"))
def _forward_neg(ent_embd, rel_embd, wr, pos_sample, neg_sample, mode, gamma):
    h, r, t, w = _gather_pos(ent_embd, rel_embd, wr, pos_sample)
    # Lane-dense candidate slab: (B, D, N) so the N candidates sit on lanes.
    negT = jnp.swapaxes(ent_embd[neg_sample], 1, 2)        # (B, D, N)
    head_batch = (mode == "head-batch")
    e = t if head_batch else h
    return _transh_score(w, e, r, negT, head_batch=head_batch, gamma=gamma)


@functools.partial(jax.jit, static_argnames=("gamma",))
def _forward_pos(ent_embd, rel_embd, wr, pos_sample, gamma):
    # Single-candidate positive path: tiny, overhead-dominated in a kernel.
    # Plain JAX / XLA fusion is faster and simpler here (per perf review).
    h, r, t, w = _gather_pos(ent_embd, rel_embd, wr, pos_sample)
    wr_h = jnp.sum(w * h, axis=-1, keepdims=True)
    wr_t = jnp.sum(w * t, axis=-1, keepdims=True)
    score = h - wr_h * w + r - (t - wr_t * w)              # (B, D)
    return (_lp_norm(score, NORM_P, axis=-1) - gamma)[:, None]   # (B, 1)


class TransH:
    def __init__(self, ent_num, rel_num, key):
        assert ENT_DIM == REL_DIM
        k1, k2, k3 = jax.random.split(key, 3)
        self.ent_embd = _xavier_uniform(k1, (ent_num, ENT_DIM))
        self.rel_embd = _xavier_uniform(k2, (rel_num, REL_DIM))
        self.wr = _xavier_uniform(k3, (rel_num, REL_DIM))
        self.gamma = GAMMA

    def __call__(self, pos_sample, neg_sample=None, mode=None):
        if neg_sample is not None:
            if mode not in ("head-batch", "tail-batch"):
                raise ValueError("mode %s not supported" % mode)
            return _forward_neg(self.ent_embd, self.rel_embd, self.wr,
                                pos_sample, neg_sample, mode, self.gamma)
        return _forward_pos(self.ent_embd, self.rel_embd, self.wr,
                            pos_sample, self.gamma)


# ----------------------------- pure-JAX reference ---------------------------
def _reference(model, pos_sample, neg_sample=None, mode=None):
    rel_renormed = _max_norm_renorm(model.rel_embd, 1.0)
    h = model.ent_embd[pos_sample[:, 0]][:, None, :]
    r = rel_renormed[pos_sample[:, 1]][:, None, :]
    t = model.ent_embd[pos_sample[:, 2]][:, None, :]
    w = model.wr[pos_sample[:, 1]][:, None, :]
    if neg_sample is not None:
        neg = model.ent_embd[neg_sample]
        wr_neg = jnp.sum(w * neg, axis=-1, keepdims=True)
        wr_neg_wr = wr_neg * w
        if mode == "head-batch":
            wr_t = jnp.sum(w * t, axis=-1, keepdims=True)
            score = neg - wr_neg_wr + (r - (t - wr_t * w))
        else:
            wr_h = jnp.sum(w * h, axis=-1, keepdims=True)
            score = h - wr_h * w + r - (neg - wr_neg_wr)
    else:
        wr_h = jnp.sum(w * h, axis=-1, keepdims=True)
        wr_t = jnp.sum(w * t, axis=-1, keepdims=True)
        score = h - wr_h * w + r - (t - wr_t * w)
    return _lp_norm(score, NORM_P, axis=-1) - model.gamma


# --------------------------------- main --------------------------------------
if __name__ == "__main__":
    ent_num, rel_num = 50, 10
    B, N = 2, 8

    model = TransH(ent_num, rel_num, jax.random.PRNGKey(0))

    kh, kr, kt, kn = jax.random.split(jax.random.PRNGKey(1), 4)
    pos_sample = jnp.stack(
        [
            jax.random.randint(kh, (B,), 0, ent_num),
            jax.random.randint(kr, (B,), 0, rel_num),
            jax.random.randint(kt, (B,), 0, ent_num),
        ],
        axis=1,
    ).astype(jnp.int32)                                    # (B, 3)
    neg_sample = jax.random.randint(kn, (B, N), 0, ent_num).astype(jnp.int32)

    score_head = jax.block_until_ready(model(pos_sample, neg_sample, "head-batch"))
    score_tail = jax.block_until_ready(model(pos_sample, neg_sample, "tail-batch"))
    score_pos = jax.block_until_ready(model(pos_sample))

    np.testing.assert_allclose(
        np.asarray(score_head),
        np.asarray(_reference(model, pos_sample, neg_sample, "head-batch")),
        rtol=1e-5, atol=1e-5)
    np.testing.assert_allclose(
        np.asarray(score_tail),
        np.asarray(_reference(model, pos_sample, neg_sample, "tail-batch")),
        rtol=1e-5, atol=1e-5)
    np.testing.assert_allclose(
        np.asarray(score_pos),
        np.asarray(_reference(model, pos_sample)),
        rtol=1e-5, atol=1e-5)

    assert score_head.shape == (B, N)
    assert score_tail.shape == (B, N)
    assert score_pos.shape == (B, 1)
    print("KERNEL_OK")
</pallas_src>

<mosaic_0001>
module attributes {stable_mosaic.version = 11 : i64} {
  func.func @_transh_kernel(%arg0: i32, %arg1: i32, %arg2: memref<8x32xf32, #tpu.memory_space<vmem>>, %arg3: memref<8x32xf32, #tpu.memory_space<vmem>>, %arg4: memref<8x32xf32, #tpu.memory_space<vmem>>, %arg5: memref<8x32x128xf32, #tpu.memory_space<vmem>>, %arg6: memref<8x128xf32, #tpu.memory_space<vmem>>) attributes {dimension_semantics = [#tpu.dimension_semantics<parallel>, #tpu.dimension_semantics<parallel>], iteration_bounds = array<i64: 1, 1>, scalar_prefetch = 0 : i64, scratch_operands = 0 : i64, tpu.core_type = #tpu.core_type<tc>, window_params = [{transform_indices = @transform_0, window_bounds = array<i64: 8, 32>}, {transform_indices = @transform_1, window_bounds = array<i64: 8, 32>}, {transform_indices = @transform_2, window_bounds = array<i64: 8, 32>}, {transform_indices = @transform_3, window_bounds = array<i64: 8, 32, 128>}, {transform_indices = @transform_4, window_bounds = array<i64: 8, 128>}]} {
    %c0 = arith.constant 0 : index
    %c0_0 = arith.constant 0 : index
    %0 = vector.load %arg2[%c0, %c0_0] : memref<8x32xf32, #tpu.memory_space<vmem>>, vector<8x32xf32>
    %c0_1 = arith.constant 0 : index
    %c0_2 = arith.constant 0 : index
    %1 = vector.load %arg3[%c0_1, %c0_2] : memref<8x32xf32, #tpu.memory_space<vmem>>, vector<8x32xf32>
    %c0_3 = arith.constant 0 : index
    %c0_4 = arith.constant 0 : index
    %2 = vector.load %arg4[%c0_3, %c0_4] : memref<8x32xf32, #tpu.memory_space<vmem>>, vector<8x32xf32>
    %c0_5 = arith.constant 0 : index
    %c0_6 = arith.constant 0 : index
    %c0_7 = arith.constant 0 : index
    %3 = vector.load %arg5[%c0_5, %c0_6, %c0_7] : memref<8x32x128xf32, #tpu.memory_space<vmem>>, vector<8x32x128xf32>
    %4 = arith.mulf %0, %1 : vector<8x32xf32>
    %cst = arith.constant dense<0.000000e+00> : vector<8xf32>
    %5 = vector.multi_reduction <add>, %4, %cst [1] : vector<8x32xf32> to vector<8xf32>
    %6 = vector.shape_cast %5 : vector<8xf32> to vector<8x1xf32>
    %7 = vector.broadcast %6 : vector<8x1xf32> to vector<8x32xf32>
    %8 = arith.mulf %7, %0 : vector<8x32xf32>
    %9 = arith.subf %1, %8 : vector<8x32xf32>
    %10 = arith.subf %2, %9 : vector<8x32xf32>
    %11 = vector.shape_cast %0 : vector<8x32xf32> to vector<8x32x1xf32>
    %12 = vector.broadcast %11 : vector<8x32x1xf32> to vector<8x32x128xf32>
    %13 = arith.mulf %12, %3 : vector<8x32x128xf32>
    %cst_8 = arith.constant dense<0.000000e+00> : vector<8x128xf32>
    %14 = vector.multi_reduction <add>, %13, %cst_8 [1] : vector<8x32x128xf32> to vector<8x128xf32>
    %15 = vector.shape_cast %14 : vector<8x128xf32> to vector<8x1x128xf32>
    %16 = vector.broadcast %15 : vector<8x1x128xf32> to vector<8x32x128xf32>
    %17 = vector.broadcast %11 : vector<8x32x1xf32> to vector<8x32x128xf32>
    %18 = arith.mulf %16, %17 : vector<8x32x128xf32>
    %19 = arith.subf %3, %18 : vector<8x32x128xf32>
    %20 = vector.shape_cast %10 : vector<8x32xf32> to vector<8x32x1xf32>
    %21 = vector.broadcast %20 : vector<8x32x1xf32> to vector<8x32x128xf32>
    %22 = arith.addf %19, %21 : vector<8x32x128xf32>
    %23 = arith.mulf %22, %22 : vector<8x32x128xf32>
    %cst_9 = arith.constant dense<0.000000e+00> : vector<8x128xf32>
    %24 = vector.multi_reduction <add>, %23, %cst_9 [1] : vector<8x32x128xf32> to vector<8x128xf32>
    %25 = math.sqrt %24 : vector<8x128xf32>
    %cst_10 = arith.constant 1.200000e+01 : f32
    %26 = vector.broadcast %cst_10 : f32 to vector<8x128xf32>
    %27 = arith.subf %25, %26 : vector<8x128xf32>
    %c0_11 = arith.constant 0 : index
    %c0_12 = arith.constant 0 : index
    %28 = vector.load %arg6[%c0_11, %c0_12] : memref<8x128xf32, #tpu.memory_space<vmem>>, vector<8x128xf32>
    tpu.vector_store %arg6[%c0_11, %c0_12], %27 {strides = array<i32>} : memref<8x128xf32, #tpu.memory_space<vmem>>, vector<8x128xf32>,
    return
  }
  func.func @transform_0(%arg0: i32, %arg1: i32) -> (i32, i32) {
    %c0_i32 = arith.constant 0 : i32
    %c0_i32_0 = arith.constant 0 : i32
    return %arg0, %c0_i32 : i32, i32
  }
  func.func @transform_1(%arg0: i32, %arg1: i32) -> (i32, i32) {
    %c0_i32 = arith.constant 0 : i32
    %c0_i32_0 = arith.constant 0 : i32
    return %arg0, %c0_i32 : i32, i32
  }
  func.func @transform_2(%arg0: i32, %arg1: i32) -> (i32, i32) {
    %c0_i32 = arith.constant 0 : i32
    %c0_i32_0 = arith.constant 0 : i32
    return %arg0, %c0_i32 : i32, i32
  }
  func.func @transform_3(%arg0: i32, %arg1: i32) -> (i32, i32, i32) {
    %c0_i32 = arith.constant 0 : i32
    %c0_i32_0 = arith.constant 0 : i32
    return %arg0, %c0_i32, %arg1 : i32, i32, i32
  }
  func.func @transform_4(%arg0: i32, %arg1: i32) -> (i32, i32) {
    %c0_i32 = arith.constant 0 : i32
    return %arg0, %arg1 : i32, i32
  }
}

</mosaic_0001>

<llo_original>
// kernel: _forward_neg.1
$region0: #{_forward_neg.1}
  #allocation0 [shape = 'u32[]', space=smem, size = 0x4, offset = 0x4, fixed_abs, tag = 'smem constant byte address 0x4 - core index']
  #allocation1 [shape = 'u32[72,128]{1,0:T(1,128)}', space=vmem, size = 0x9000, scoped, tag = 'internal scratch']
  %s0 = inlined_call_operand.vmem [shape: f32[8,32], index: 0, kind: input, shape index: {}]
  %s1 = inlined_call_operand.vmem [shape: f32[8,32], index: 1, kind: input, shape index: {}]
  %s2 = inlined_call_operand.vmem [shape: f32[8,32], index: 2, kind: input, shape index: {}]
  %s3 = inlined_call_operand.vmem [shape: f32[8,32,128], index: 3, kind: input, shape index: {}]
  %s4 = inlined_call_operand.vmem [shape: f32[8,128], index: 4, kind: output, shape index: {}]
  %s5 = sld [smem:[#allocation0]]
  $region26: #{_forward_neg.1} parent=0
    _
  %s7 = ssub.s32 1, %s5
  %s8 = scalar_select 0, %s7, %s5
  // Predicated region
  $region2: #{_forward_neg.1} parent=0 // pred_check
    _
  $region3: #{_forward_neg.1} parent=0 // pred_check_branch
    %10 = sbr.rel (0) target = $region5
  $region4: #{_forward_neg.1} parent=0 // pred_region
    _
  $region5: #{_forward_neg.1} parent=0 // pred_fallthru
    _
  // Predicated region
  $region6: #{_forward_neg.1} parent=0 // pred_check
    _
  $region7: #{_forward_neg.1} parent=0 // pred_check_branch
    %12 = sbr.rel (0) target = $region9
  $region8: #{_forward_neg.1} parent=0 // pred_region
    _
  $region9: #{_forward_neg.1} parent=0 // pred_fallthru
    _
  // Predicated region
  $region10: #{_forward_neg.1} parent=0 // pred_check
    _
  $region11: #{_forward_neg.1} parent=0 // pred_check_branch
    %14 = sbr.rel (0) target = $region13
  $region12: #{_forward_neg.1} parent=0 // pred_region
    _
  $region13: #{_forward_neg.1} parent=0 // pred_fallthru
    _
  // Predicated region
  $region14: #{_forward_neg.1} parent=0 // pred_check
    _
  $region15: #{_forward_neg.1} parent=0 // pred_check_branch
    %16 = sbr.rel (0) target = $region17
  $region16: #{_forward_neg.1} parent=0 // pred_region
    _
  $region17: #{_forward_neg.1} parent=0 // pred_fallthru
    _
  %v17 = vld [vmem:[%s0] sm:$0xff]
  %v18 = vld [vmem:[%s1] sm:$0xff]
  %v19 = vld [vmem:[%s2] sm:$0xff]
  %v20 = vld [vmem:[%s3] sm:$0xff]
  %v21 = vld [vmem:[%s3 + $0x8] sm:$0xff]
  %v22 = vld [vmem:[%s3 + $0x10] sm:$0xff]
  %v23 = vld [vmem:[%s3 + $0x18] sm:$0xff]
  %v24 = vld [vmem:[%s3 + $0x20] sm:$0xff]
  %v25 = vld [vmem:[%s3 + $0x28] sm:$0xff]
  %v26 = vld [vmem:[%s3 + $0x30] sm:$0xff]
  %v27 = vld [vmem:[%s3 + $0x38] sm:$0xff]
  %v28 = vld [vmem:[%s3 + $0x40] sm:$0xff]
  %v29 = vld [vmem:[%s3 + $0x48] sm:$0xff]
  %v30 = vld [vmem:[%s3 + $0x50] sm:$0xff]
  %v31 = vld [vmem:[%s3 + $0x58] sm:$0xff]
  %v32 = vld [vmem:[%s3 + $0x60] sm:$0xff]
  %v33 = vld [vmem:[%s3 + $0x68] sm:$0xff]
  %v34 = vld [vmem:[%s3 + $0x70] sm:$0xff]
  %v35 = vld [vmem:[%s3 + $0x78] sm:$0xff]
  %v36 = vld [vmem:[%s3 + $0x80] sm:$0xff]
  %v37 = vld [vmem:[%s3 + $0x88] sm:$0xff]
  %v38 = vld [vmem:[%s3 + $0x90] sm:$0xff]
  %v39 = vld [vmem:[%s3 + $0x98] sm:$0xff]
  %v40 = vld [vmem:[%s3 + $0xa0] sm:$0xff]
  %v41 = vld [vmem:[%s3 + $0xa8] sm:$0xff]
  %v42 = vld [vmem:[%s3 + $0xb0] sm:$0xff]
  %v43 = vld [vmem:[%s3 + $0xb8] sm:$0xff]
  %v44 = vld [vmem:[%s3 + $0xc0] sm:$0xff]
  %v45 = vld [vmem:[%s3 + $0xc8] sm:$0xff]
  %v46 = vld [vmem:[%s3 + $0xd0] sm:$0xff]
  %v47 = vld [vmem:[%s3 + $0xd8] sm:$0xff]
  %v48 = vld [vmem:[%s3 + $0xe0] sm:$0xff]
  %v49 = vld [vmem:[%s3 + $0xe8] sm:$0xff]
  %v50 = vld [vmem:[%s3 + $0xf0] sm:$0xff]
  %v51 = vld [vmem:[%s3 + $0xf8] sm:$0xff]
  %v52 = vmul.f32 %v17, %v18
  %vm53 = vcmask 261120
  %v54 = vsel %vm53, %v52, 0.0
  %55 = vadd.xlane.f32.xlu0 %v54
  %v56 = vpop.xlane.xlu0 %55
  %v57 = vmul.f32 %v56, %v17
  %v58 = vsub.f32 %v18, %v57
  %v59 = vsub.f32 %v19, %v58
  %v60 = vperm.slane %v17, 0
  %v61 = vlaneseq
  %v62 = vshrl.u32 %v61, 7
  %64 = vset.pattern.permute.xlu0 %v62
  %65 = vperm.xlu0 %64, %v60
  %v66 = vpop.permute.xlu0 %65
  %v67 = vlaneseq
  %v68 = vshrl.u32 %v67, 7
  %v69 = vadd.s32 %v68, 8
  %70 = vset.pattern.permute.xlu0 %v69
  %71 = vperm.xlu0 %70, %v60
  %v72 = vpop.permute.xlu0 %71
  %v73 = vlaneseq
  %v74 = vshrl.u32 %v73, 7
  %v75 = vadd.s32 %v74, 16
  %76 = vset.pattern.permute.xlu0 %v75
  %77 = vperm.xlu0 %76, %v60
  %v78 = vpop.permute.xlu0 %77
  %v79 = vlaneseq
  %v80 = vshrl.u32 %v79, 7
  %v81 = vadd.s32 %v80, 24
  %82 = vset.pattern.permute.xlu0 %v81
  %83 = vperm.xlu0 %82, %v60
  %v84 = vpop.permute.xlu0 %83
  %v85 = vperm.slane %v17, 1
  %v86 = vlaneseq
  %v87 = vshrl.u32 %v86, 7
  %89 = vset.pattern.permute.xlu0 %v87
  %90 = vperm.xlu0 %89, %v85
  %v91 = vpop.permute.xlu0 %90
  %v92 = vlaneseq
  %v93 = vshrl.u32 %v92, 7
  %v94 = vadd.s32 %v93, 8
  %95 = vset.pattern.permute.xlu0 %v94
  %96 = vperm.xlu0 %95, %v85
  %v97 = vpop.permute.xlu0 %96
  %v98 = vlaneseq
  %v99 = vshrl.u32 %v98, 7
  %v100 = vadd.s32 %v99, 16
  %101 = vset.pattern.permute.xlu0 %v100
  %102 = vperm.xlu0 %101, %v85
  %v103 = vpop.permute.xlu0 %102
  %v104 = vlaneseq
  %v105 = vshrl.u32 %v104, 7
  %v106 = vadd.s32 %v105, 24
  %107 = vset.pattern.permute.xlu0 %v106
  %108 = vperm.xlu0 %107, %v85
  %v109 = vpop.permute.xlu0 %108
  %v110 = vperm.slane %v17, 2
  %v111 = vlaneseq
  %v112 = vshrl.u32 %v111, 7
  %114 = vset.pattern.permute.xlu0 %v112
  %115 = vperm.xlu0 %114, %v110
  %v116 = vpop.permute.xlu0 %115
  %v117 = vlaneseq
  %v118 = vshrl.u32 %v117, 7
  %v119 = vadd.s32 %v118, 8
  %120 = vset.pattern.permute.xlu0 %v119
  %121 = vperm.xlu0 %120, %v110
  %v122 = vpop.permute.xlu0 %121
  %v123 = vlaneseq
  %v124 = vshrl.u32 %v123, 7
  %v125 = vadd.s32 %v124, 16
  %126 = vset.pattern.permute.xlu0 %v125
  %127 = vperm.xlu0 %126, %v110
  %v128 = vpop.permute.xlu0 %127
  %v129 = vlaneseq
  %v130 = vshrl.u32 %v129, 7
  %v131 = vadd.s32 %v130, 24
  %132 = vset.pattern.permute.xlu0 %v131
  %133 = vperm.xlu0 %132, %v110
  %v134 = vpop.permute.xlu0 %133
  %v135 = vperm.slane %v17, 3
  %v136 = vlaneseq
  %v137 = vshrl.u32 %v136, 7
  %139 = vset.pattern.permute.xlu0 %v137
  %140 = vperm.xlu0 %139, %v135
  %v141 = vpop.permute.xlu0 %140
  %v142 = vlaneseq
  %v143 = vshrl.u32 %v142, 7
  %v144 = vadd.s32 %v143, 8
  %145 = vset.pattern.permute.xlu0 %v144
  %146 = vperm.xlu0 %145, %v135
  %v147 = vpop.permute.xlu0 %146
  %v148 = vlaneseq
  %v149 = vshrl.u32 %v148, 7
  %v150 = vadd.s32 %v149, 16
  %151 = vset.pattern.permute.xlu0 %v150
  %152 = vperm.xlu0 %151, %v135
  %v153 = vpop.permute.xlu0 %152
  %v154 = vlaneseq
  %v155 = vshrl.u32 %v154, 7
  %v156 = vadd.s32 %v155, 24
  %157 = vset.pattern.permute.xlu0 %v156
  %158 = vperm.xlu0 %157, %v135
  %v159 = vpop.permute.xlu0 %158
  %v160 = vperm.slane %v17, 4
  %v161 = vlaneseq
  %v162 = vshrl.u32 %v161, 7
  %164 = vset.pattern.permute.xlu0 %v162
  %165 = vperm.xlu0 %164, %v160
  %v166 = vpop.permute.xlu0 %165
  %v167 = vlaneseq
  %v168 = vshrl.u32 %v167, 7
  %v169 = vadd.s32 %v168, 8
  %170 = vset.pattern.permute.xlu0 %v169
  %171 = vperm.xlu0 %170, %v160
  %v172 = vpop.permute.xlu0 %171
  %v173 = vlaneseq
  %v174 = vshrl.u32 %v173, 7
  %v175 = vadd.s32 %v174, 16
  %176 = vset.pattern.permute.xlu0 %v175
  %177 = vperm.xlu0 %176, %v160
  %v178 = vpop.permute.xlu0 %177
  %v179 = vlaneseq
  %v180 = vshrl.u32 %v179, 7
  %v181 = vadd.s32 %v180, 24
  %182 = vset.pattern.permute.xlu0 %v181
  %183 = vperm.xlu0 %182, %v160
  %v184 = vpop.permute.xlu0 %183
  %v185 = vperm.slane %v17, 5
  %v186 = vlaneseq
  %v187 = vshrl.u32 %v186, 7
  %189 = vset.pattern.permute.xlu0 %v187
  %190 = vperm.xlu0 %189, %v185
  %v191 = vpop.permute.xlu0 %190
  %v192 = vlaneseq
  %v193 = vshrl.u32 %v192, 7
  %v194 = vadd.s32 %v193, 8
  %195 = vset.pattern.permute.xlu0 %v194
  %196 = vperm.xlu0 %195, %v185
  %v197 = vpop.permute.xlu0 %196
  %v198 = vlaneseq
  %v199 = vshrl.u32 %v198, 7
  %v200 = vadd.s32 %v199, 16
  %201 = vset.pattern.permute.xlu0 %v200
  %202 = vperm.xlu0 %201, %v185
  %v203 = vpop.permute.xlu0 %202
  %v204 = vlaneseq
  %v205 = vshrl.u32 %v204, 7
  %v206 = vadd.s32 %v205, 24
  %207 = vset.pattern.permute.xlu0 %v206
  %208 = vperm.xlu0 %207, %v185
  %v209 = vpop.permute.xlu0 %208
  %v210 = vperm.slane %v17, 6
  %v211 = vlaneseq
  %v212 = vshrl.u32 %v211, 7
  %214 = vset.pattern.permute.xlu0 %v212
  %215 = vperm.xlu0 %214, %v210
  %v216 = vpop.permute.xlu0 %215
  %v217 = vlaneseq
  %v218 = vshrl.u32 %v217, 7
  %v219 = vadd.s32 %v218, 8
  %220 = vset.pattern.permute.xlu0 %v219
  %221 = vperm.xlu0 %220, %v210
  %v222 = vpop.permute.xlu0 %221
  %v223 = vlaneseq
  %v224 = vshrl.u32 %v223, 7
  %v225 = vadd.s32 %v224, 16
  %226 = vset.pattern.permute.xlu0 %v225
  %227 = vperm.xlu0 %226, %v210
  %v228 = vpop.permute.xlu0 %227
  %v229 = vlaneseq
  %v230 = vshrl.u32 %v229, 7
  %v231 = vadd.s32 %v230, 24
  %232 = vset.pattern.permute.xlu0 %v231
  %233 = vperm.xlu0 %232, %v210
  %v234 = vpop.permute.xlu0 %233
  %v235 = vperm.slane %v17, 7
  %v236 = vlaneseq
  %v237 = vshrl.u32 %v236, 7
  %239 = vset.pattern.permute.xlu0 %v237
  %240 = vperm.xlu0 %239, %v235
  %v241 = vpop.permute.xlu0 %240
  %v242 = vlaneseq
  %v243 = vshrl.u32 %v242, 7
  %v244 = vadd.s32 %v243, 8
  %245 = vset.pattern.permute.xlu0 %v244
  %246 = vperm.xlu0 %245, %v235
  %v247 = vpop.permute.xlu0 %246
  %v248 = vlaneseq
  %v249 = vshrl.u32 %v248, 7
  %v250 = vadd.s32 %v249, 16
  %251 = vset.pattern.permute.xlu0 %v250
  %252 = vperm.xlu0 %251, %v235
  %v253 = vpop.permute.xlu0 %252
  %v254 = vlaneseq
  %v255 = vshrl.u32 %v254, 7
  %v256 = vadd.s32 %v255, 24
  %257 = vset.pattern.permute.xlu0 %v256
  %258 = vperm.xlu0 %257, %v235
  %v259 = vpop.permute.xlu0 %258
  %v260 = vmul.f32 %v66, %v20
  %v261 = vmul.f32 %v72, %v21
  %v262 = vmul.f32 %v78, %v22
  %v263 = vmul.f32 %v84, %v23
  %v264 = vmul.f32 %v91, %v24
  %v265 = vmul.f32 %v97, %v25
  %v266 = vmul.f32 %v103, %v26
  %v267 = vmul.f32 %v109, %v27
  %v268 = vmul.f32 %v116, %v28
  %v269 = vmul.f32 %v122, %v29
  %v270 = vmul.f32 %v128, %v30
  %v271 = vmul.f32 %v134, %v31
  %v272 = vmul.f32 %v141, %v32
  %v273 = vmul.f32 %v147, %v33
  %v274 = vmul.f32 %v153, %v34
  %v275 = vmul.f32 %v159, %v35
  %v276 = vmul.f32 %v166, %v36
  %v277 = vmul.f32 %v172, %v37
  %v278 = vmul.f32 %v178, %v38
  %v279 = vmul.f32 %v184, %v39
  %v280 = vmul.f32 %v191, %v40
  %v281 = vmul.f32 %v197, %v41
  %v282 = vmul.f32 %v203, %v42
  %v283 = vmul.f32 %v209, %v43
  %v284 = vmul.f32 %v216, %v44
  %v285 = vmul.f32 %v222, %v45
  %v286 = vmul.f32 %v228, %v46
  %v287 = vmul.f32 %v234, %v47
  %v288 = vmul.f32 %v241, %v48
  %v289 = vmul.f32 %v247, %v49
  %v290 = vmul.f32 %v253, %v50
  %v291 = vmul.f32 %v259, %v51
  %v292 = vadd.f32 %v260, %v261
  %v293 = vadd.f32 %v292, %v262
  %v294 = vadd.f32 %v293, %v263
  %v295 = vrot.slane %v294, 4
  %v296 = vadd.f32 %v294, %v295
  %v297 = vrot.slane %v296, 2
  %v298 = vadd.f32 %v296, %v297
  %v299 = vrot.slane %v298, 1
  %v300 = vadd.f32 %v298, %v299
  %v301 = vadd.f32 %v264, %v265
  %v302 = vadd.f32 %v301, %v266
  %v303 = vadd.f32 %v302, %v267
  %v304 = vrot.slane %v303, 4
  %v305 = vadd.f32 %v303, %v304
  %v306 = vrot.slane %v305, 2
  %v307 = vadd.f32 %v305, %v306
  %v308 = vrot.slane %v307, 1
  %v309 = vadd.f32 %v307, %v308
  %v310 = vadd.f32 %v268, %v269
  %v311 = vadd.f32 %v310, %v270
  %v312 = vadd.f32 %v311, %v271
  %v313 = vrot.slane %v312, 4
  %v314 = vadd.f32 %v312, %v313
  %v315 = vrot.slane %v314, 2
  %v316 = vadd.f32 %v314, %v315
  %v317 = vrot.slane %v316, 1
  %v318 = vadd.f32 %v316, %v317
  %v319 = vadd.f32 %v272, %v273
  %v320 = vadd.f32 %v319, %v274
  %v321 = vadd.f32 %v320, %v275
  %v322 = vrot.slane %v321, 4
  %v323 = vadd.f32 %v321, %v322
  %v324 = vrot.slane %v323, 2
  %v325 = vadd.f32 %v323, %v324
  %v326 = vrot.slane %v325, 1
  %v327 = vadd.f32 %v325, %v326
  %v328 = vadd.f32 %v276, %v277
  %v329 = vadd.f32 %v328, %v278
  %v330 = vadd.f32 %v329, %v279
  %v331 = vrot.slane %v330, 4
  %v332 = vadd.f32 %v330, %v331
  %v333 = vrot.slane %v332, 2
  %v334 = vadd.f32 %v332, %v333
  %v335 = vrot.slane %v334, 1
  %v336 = vadd.f32 %v334, %v335
  %v337 = vadd.f32 %v280, %v281
  %v338 = vadd.f32 %v337, %v282
  %v339 = vadd.f32 %v338, %v283
  %v340 = vrot.slane %v339, 4
  %v341 = vadd.f32 %v339, %v340
  %v342 = vrot.slane %v341, 2
  %v343 = vadd.f32 %v341, %v342
  %v344 = vrot.slane %v343, 1
  %v345 = vadd.f32 %v343, %v344
  %v346 = vadd.f32 %v284, %v285
  %v347 = vadd.f32 %v346, %v286
  %v348 = vadd.f32 %v347, %v287
  %v349 = vrot.slane %v348, 4
  %v350 = vadd.f32 %v348, %v349
  %v351 = vrot.slane %v350, 2
  %v352 = vadd.f32 %v350, %v351
  %v353 = vrot.slane %v352, 1
  %v354 = vadd.f32 %v352, %v353
  %v355 = vadd.f32 %v288, %v289
  %v356 = vadd.f32 %v355, %v290
  %v357 = vadd.f32 %v356, %v291
  %v358 = vrot.slane %v357, 4
  %v359 = vadd.f32 %v357, %v358
  %v360 = vrot.slane %v359, 2
  %v361 = vadd.f32 %v359, %v360
  %v362 = vrot.slane %v361, 1
  %v363 = vadd.f32 %v361, %v362
  %v364 = vmul.f32 %v300, %v66
  %v365 = vmul.f32 %v300, %v72
  %v366 = vmul.f32 %v300, %v78
  %v367 = vmul.f32 %v300, %v84
  %v368 = vmul.f32 %v309, %v91
  %v369 = vmul.f32 %v309, %v97
  %v370 = vmul.f32 %v309, %v103
  %v371 = vmul.f32 %v309, %v109
  %v372 = vmul.f32 %v318, %v116
  %v373 = vmul.f32 %v318, %v122
  %v374 = vmul.f32 %v318, %v128
  %v375 = vmul.f32 %v318, %v134
  %v376 = vmul.f32 %v327, %v141
  %v377 = vmul.f32 %v327, %v147
  %v378 = vmul.f32 %v327, %v153
  %v379 = vmul.f32 %v327, %v159
  %v380 = vmul.f32 %v336, %v166
  %v381 = vmul.f32 %v336, %v172
  %v382 = vmul.f32 %v336, %v178
  %v383 = vmul.f32 %v336, %v184
  %v384 = vmul.f32 %v345, %v191
  %v385 = vmul.f32 %v345, %v197
  %v386 = vmul.f32 %v345, %v203
  %v387 = vmul.f32 %v345, %v209
  %v388 = vmul.f32 %v354, %v216
  %v389 = vmul.f32 %v354, %v222
  %v390 = vmul.f32 %v354, %v228
  %v391 = vmul.f32 %v354, %v234
  %v392 = vmul.f32 %v363, %v241
  %v393 = vmul.f32 %v363, %v247
  %v394 = vmul.f32 %v363, %v253
  %v395 = vmul.f32 %v363, %v259
  %v396 = vsub.f32 %v20, %v364
  %v397 = vsub.f32 %v21, %v365
  %v398 = vsub.f32 %v22, %v366
  %v399 = vsub.f32 %v23, %v367
  %v400 = vsub.f32 %v24, %v368
  %v401 = vsub.f32 %v25, %v369
  %v402 = vsub.f32 %v26, %v370
  %v403 = vsub.f32 %v27, %v371
  %v404 = vsub.f32 %v28, %v372
  %v405 = vsub.f32 %v29, %v373
  %v406 = vsub.f32 %v30, %v374
  %v407 = vsub.f32 %v31, %v375
  %v408 = vsub.f32 %v32, %v376
  %v409 = vsub.f32 %v33, %v377
  %v410 = vsub.f32 %v34, %v378
  %v411 = vsub.f32 %v35, %v379
  %v412 = vsub.f32 %v36, %v380
  %v413 = vsub.f32 %v37, %v381
  %v414 = vsub.f32 %v38, %v382
  %v415 = vsub.f32 %v39, %v383
  %v416 = vsub.f32 %v40, %v384
  %v417 = vsub.f32 %v41, %v385
  %v418 = vsub.f32 %v42, %v386
  %v419 = vsub.f32 %v43, %v387
  %v420 = vsub.f32 %v44, %v388
  %v421 = vsub.f32 %v45, %v389
  %v422 = vsub.f32 %v46, %v390
  %v423 = vsub.f32 %v47, %v391
  %v424 = vsub.f32 %v48, %v392
  %v425 = vsub.f32 %v49, %v393
  %v426 = vsub.f32 %v50, %v394
  %v427 = vsub.f32 %v51, %v395
  %v428 = vperm.slane %v59, 0
  %v429 = vlaneseq
  %v430 = vshrl.u32 %v429, 7
  %432 = vset.pattern.permute.xlu0 %v430
  %433 = vperm.xlu0 %432, %v428
  %v434 = vpop.permute.xlu0 %433
  %v435 = vlaneseq
  %v436 = vshrl.u32 %v435, 7
  %v437 = vadd.s32 %v436, 8
  %438 = vset.pattern.permute.xlu0 %v437
  %439 = vperm.xlu0 %438, %v428
  %v440 = vpop.permute.xlu0 %439
  %v441 = vlaneseq
  %v442 = vshrl.u32 %v441, 7
  %v443 = vadd.s32 %v442, 16
  %444 = vset.pattern.permute.xlu0 %v443
  %445 = vperm.xlu0 %444, %v428
  %v446 = vpop.permute.xlu0 %445
  %v447 = vlaneseq
  %v448 = vshrl.u32 %v447, 7
  %v449 = vadd.s32 %v448, 24
  %450 = vset.pattern.permute.xlu0 %v449
  %451 = vperm.xlu0 %450, %v428
  %v452 = vpop.permute.xlu0 %451
  %v453 = vperm.slane %v59, 1
  %v454 = vlaneseq
  %v455 = vshrl.u32 %v454, 7
  %457 = vset.pattern.permute.xlu0 %v455
  %458 = vperm.xlu0 %457, %v453
  %v459 = vpop.permute.xlu0 %458
  %v460 = vlaneseq
  %v461 = vshrl.u32 %v460, 7
  %v462 = vadd.s32 %v461, 8
  %463 = vset.pattern.permute.xlu0 %v462
  %464 = vperm.xlu0 %463, %v453
  %v465 = vpop.permute.xlu0 %464
  %v466 = vlaneseq
  %v467 = vshrl.u32 %v466, 7
  %v468 = vadd.s32 %v467, 16
  %469 = vset.pattern.permute.xlu0 %v468
  %470 = vperm.xlu0 %469, %v453
  %v471 = vpop.permute.xlu0 %470
  %v472 = vlaneseq
  %v473 = vshrl.u32 %v472, 7
  %v474 = vadd.s32 %v473, 24
  %475 = vset.pattern.permute.xlu0 %v474
  %476 = vperm.xlu0 %475, %v453
  %v477 = vpop.permute.xlu0 %476
  %v478 = vperm.slane %v59, 2
  %v479 = vlaneseq
  %v480 = vshrl.u32 %v479, 7
  %482 = vset.pattern.permute.xlu0 %v480
  %483 = vperm.xlu0 %482, %v478
  %v484 = vpop.permute.xlu0 %483
  %v485 = vlaneseq
  %v486 = vshrl.u32 %v485, 7
  %v487 = vadd.s32 %v486, 8
  %488 = vset.pattern.permute.xlu0 %v487
  %489 = vperm.xlu0 %488, %v478
  %v490 = vpop.permute.xlu0 %489
  %v491 = vlaneseq
  %v492 = vshrl.u32 %v491, 7
  %v493 = vadd.s32 %v492, 16
  %494 = vset.pattern.permute.xlu0 %v493
  %495 = vperm.xlu0 %494, %v478
  %v496 = vpop.permute.xlu0 %495
  %v497 = vlaneseq
  %v498 = vshrl.u32 %v497, 7
  %v499 = vadd.s32 %v498, 24
  %500 = vset.pattern.permute.xlu0 %v499
  %501 = vperm.xlu0 %500, %v478
  %v502 = vpop.permute.xlu0 %501
  %v503 = vperm.slane %v59, 3
  %v504 = vlaneseq
  %v505 = vshrl.u32 %v504, 7
  %507 = vset.pattern.permute.xlu0 %v505
  %508 = vperm.xlu0 %507, %v503
  %v509 = vpop.permute.xlu0 %508
  %v510 = vlaneseq
  %v511 = vshrl.u32 %v510, 7
  %v512 = vadd.s32 %v511, 8
  %513 = vset.pattern.permute.xlu0 %v512
  %514 = vperm.xlu0 %513, %v503
  %v515 = vpop.permute.xlu0 %514
  %v516 = vlaneseq
  %v517 = vshrl.u32 %v516, 7
  %v518 = vadd.s32 %v517, 16
  %519 = vset.pattern.permute.xlu0 %v518
  %520 = vperm.xlu0 %519, %v503
  %v521 = vpop.permute.xlu0 %520
  %v522 = vlaneseq
  %v523 = vshrl.u32 %v522, 7
  %v524 = vadd.s32 %v523, 24
  %525 = vset.pattern.permute.xlu0 %v524
  %526 = vperm.xlu0 %525, %v503
  %v527 = vpop.permute.xlu0 %526
  %v528 = vperm.slane %v59, 4
  %v529 = vlaneseq
  %v530 = vshrl.u32 %v529, 7
  %532 = vset.pattern.permute.xlu0 %v530
  %533 = vperm.xlu0 %532, %v528
  %v534 = vpop.permute.xlu0 %533
  %v535 = vlaneseq
  %v536 = vshrl.u32 %v535, 7
  %v537 = vadd.s32 %v536, 8
  %538 = vset.pattern.permute.xlu0 %v537
  %539 = vperm.xlu0 %538, %v528
  %v540 = vpop.permute.xlu0 %539
  %v541 = vlaneseq
  %v542 = vshrl.u32 %v541, 7
  %v543 = vadd.s32 %v542, 16
  %544 = vset.pattern.permute.xlu0 %v543
  %545 = vperm.xlu0 %544, %v528
  %v546 = vpop.permute.xlu0 %545
  %v547 = vlaneseq
  %v548 = vshrl.u32 %v547, 7
  %v549 = vadd.s32 %v548, 24
  %550 = vset.pattern.permute.xlu0 %v549
  %551 = vperm.xlu0 %550, %v528
  %v552 = vpop.permute.xlu0 %551
  %v553 = vperm.slane %v59, 5
  %v554 = vlaneseq
  %v555 = vshrl.u32 %v554, 7
  %557 = vset.pattern.permute.xlu0 %v555
  %558 = vperm.xlu0 %557, %v553
  %v559 = vpop.permute.xlu0 %558
  %v560 = vlaneseq
  %v561 = vshrl.u32 %v560, 7
  %v562 = vadd.s32 %v561, 8
  %563 = vset.pattern.permute.xlu0 %v562
  %564 = vperm.xlu0 %563, %v553
  %v565 = vpop.permute.xlu0 %564
  %v566 = vlaneseq
  %v567 = vshrl.u32 %v566, 7
  %v568 = vadd.s32 %v567, 16
  %569 = vset.pattern.permute.xlu0 %v568
  %570 = vperm.xlu0 %569, %v553
  %v571 = vpop.permute.xlu0 %570
  %v572 = vlaneseq
  %v573 = vshrl.u32 %v572, 7
  %v574 = vadd.s32 %v573, 24
  %575 = vset.pattern.permute.xlu0 %v574
  %576 = vperm.xlu0 %575, %v553
  %v577 = vpop.permute.xlu0 %576
  %v578 = vperm.slane %v59, 6
  %v579 = vlaneseq
  %v580 = vshrl.u32 %v579, 7
  %582 = vset.pattern.permute.xlu0 %v580
  %583 = vperm.xlu0 %582, %v578
  %v584 = vpop.permute.xlu0 %583
  %v585 = vlaneseq
  %v586 = vshrl.u32 %v585, 7
  %v587 = vadd.s32 %v586, 8
  %588 = vset.pattern.permute.xlu0 %v587
  %589 = vperm.xlu0 %588, %v578
  %v590 = vpop.permute.xlu0 %589
  %v591 = vlaneseq
  %v592 = vshrl.u32 %v591, 7
  %v593 = vadd.s32 %v592, 16
  %594 = vset.pattern.permute.xlu0 %v593
  %595 = vperm.xlu0 %594, %v578
  %v596 = vpop.permute.xlu0 %595
  %v597 = vlaneseq
  %v598 = vshrl.u32 %v597, 7
  %v599 = vadd.s32 %v598, 24
  %600 = vset.pattern.permute.xlu0 %v599
  %601 = vperm.xlu0 %600, %v578
  %v602 = vpop.permute.xlu0 %601
  %v603 = vperm.slane %v59, 7
  %v604 = vlaneseq
  %v605 = vshrl.u32 %v604, 7
  %607 = vset.pattern.permute.xlu0 %v605
  %608 = vperm.xlu0 %607, %v603
  %v609 = vpop.permute.xlu0 %608
  %v610 = vlaneseq
  %v611 = vshrl.u32 %v610, 7
  %v612 = vadd.s32 %v611, 8
  %613 = vset.pattern.permute.xlu0 %v612
  %614 = vperm.xlu0 %613, %v603
  %v615 = vpop.permute.xlu0 %614
  %v616 = vlaneseq
  %v617 = vshrl.u32 %v616, 7
  %v618 = vadd.s32 %v617, 16
  %619 = vset.pattern.permute.xlu0 %v618
  %620 = vperm.xlu0 %619, %v603
  %v621 = vpop.permute.xlu0 %620
  %v622 = vlaneseq
  %v623 = vshrl.u32 %v622, 7
  %v624 = vadd.s32 %v623, 24
  %625 = vset.pattern.permute.xlu0 %v624
  %626 = vperm.xlu0 %625, %v603
  %v627 = vpop.permute.xlu0 %626
  %v628 = vadd.f32 %v396, %v434
  %v629 = vadd.f32 %v397, %v440
  %v630 = vadd.f32 %v398, %v446
  %v631 = vadd.f32 %v399, %v452
  %v632 = vadd.f32 %v400, %v459
  %v633 = vadd.f32 %v401, %v465
  %v634 = vadd.f32 %v402, %v471
  %v635 = vadd.f32 %v403, %v477
  %v636 = vadd.f32 %v404, %v484
  %v637 = vadd.f32 %v405, %v490
  %v638 = vadd.f32 %v406, %v496
  %v639 = vadd.f32 %v407, %v502
  %v640 = vadd.f32 %v408, %v509
  %v641 = vadd.f32 %v409, %v515
  %v642 = vadd.f32 %v410, %v521
  %v643 = vadd.f32 %v411, %v527
  %v644 = vadd.f32 %v412, %v534
  %v645 = vadd.f32 %v413, %v540
  %v646 = vadd.f32 %v414, %v546
  %v647 = vadd.f32 %v415, %v552
  %v648 = vadd.f32 %v416, %v559
  %v649 = vadd.f32 %v417, %v565
  %v650 = vadd.f32 %v418, %v571
  %v651 = vadd.f32 %v419, %v577
  %v652 = vadd.f32 %v420, %v584
  %v653 = vadd.f32 %v421, %v590
  %v654 = vadd.f32 %v422, %v596
  %v655 = vadd.f32 %v423, %v602
  %v656 = vadd.f32 %v424, %v609
  %v657 = vadd.f32 %v425, %v615
  %v658 = vadd.f32 %v426, %v621
  %v659 = vadd.f32 %v427, %v627
  %v660 = vmul.f32 %v628, %v628
  %v661 = vmul.f32 %v629, %v629
  %v662 = vmul.f32 %v630, %v630
  %v663 = vmul.f32 %v631, %v631
  %v664 = vmul.f32 %v632, %v632
  %v665 = vmul.f32 %v633, %v633
  %v666 = vmul.f32 %v634, %v634
  %v667 = vmul.f32 %v635, %v635
  %v668 = vmul.f32 %v636, %v636
  %v669 = vmul.f32 %v637, %v637
  %v670 = vmul.f32 %v638, %v638
  %v671 = vmul.f32 %v639, %v639
  %v672 = vmul.f32 %v640, %v640
  %v673 = vmul.f32 %v641, %v641
  %v674 = vmul.f32 %v642, %v642
  %v675 = vmul.f32 %v643, %v643
  %v676 = vmul.f32 %v644, %v644
  %v677 = vmul.f32 %v645, %v645
  %v678 = vmul.f32 %v646, %v646
  %v679 = vmul.f32 %v647, %v647
  %v680 = vmul.f32 %v648, %v648
  %v681 = vmul.f32 %v649, %v649
  %v682 = vmul.f32 %v650, %v650
  %v683 = vmul.f32 %v651, %v651
  %v684 = vmul.f32 %v652, %v652
  %v685 = vmul.f32 %v653, %v653
  %v686 = vmul.f32 %v654, %v654
  %v687 = vmul.f32 %v655, %v655
  %v688 = vmul.f32 %v656, %v656
  %v689 = vmul.f32 %v657, %v657
  %v690 = vmul.f32 %v658, %v658
  %v691 = vmul.f32 %v659, %v659
  %v692 = vadd.f32 %v660, %v661
  %v693 = vadd.f32 %v692, %v662
  %v694 = vadd.f32 %v693, %v663
  %v695 = vrot.slane %v694, 4
  %v696 = vadd.f32 %v694, %v695
  %v697 = vrot.slane %v696, 2
  %v698 = vadd.f32 %v696, %v697
  %v699 = vrot.slane %v698, 1
  %v700 = vadd.f32 %v698, %v699
  %v701 = vadd.f32 %v664, %v665
  %v702 = vadd.f32 %v701, %v666
  %v703 = vadd.f32 %v702, %v667
  %v704 = vrot.slane %v703, 4
  %v705 = vadd.f32 %v703, %v704
  %v706 = vrot.slane %v705, 2
  %v707 = vadd.f32 %v705, %v706
  %v708 = vrot.slane %v707, 1
  %v709 = vadd.f32 %v707, %v708
  %v710 = vadd.f32 %v668, %v669
  %v711 = vadd.f32 %v710, %v670
  %v712 = vadd.f32 %v711, %v671
  %v713 = vrot.slane %v712, 4
  %v714 = vadd.f32 %v712, %v713
  %v715 = vrot.slane %v714, 2
  %v716 = vadd.f32 %v714, %v715
  %v717 = vrot.slane %v716, 1
  %v718 = vadd.f32 %v716, %v717
  %v719 = vadd.f32 %v672, %v673
  %v720 = vadd.f32 %v719, %v674
  %v721 = vadd.f32 %v720, %v675
  %v722 = vrot.slane %v721, 4
  %v723 = vadd.f32 %v721, %v722
  %v724 = vrot.slane %v723, 2
  %v725 = vadd.f32 %v723, %v724
  %v726 = vrot.slane %v725, 1
  %v727 = vadd.f32 %v725, %v726
  %v728 = vadd.f32 %v676, %v677
  %v729 = vadd.f32 %v728, %v678
  %v730 = vadd.f32 %v729, %v679
  %v731 = vrot.slane %v730, 4
  %v732 = vadd.f32 %v730, %v731
  %v733 = vrot.slane %v732, 2
  %v734 = vadd.f32 %v732, %v733
  %v735 = vrot.slane %v734, 1
  %v736 = vadd.f32 %v734, %v735
  %v737 = vadd.f32 %v680, %v681
  %v738 = vadd.f32 %v737, %v682
  %v739 = vadd.f32 %v738, %v683
  %v740 = vrot.slane %v739, 4
  %v741 = vadd.f32 %v739, %v740
  %v742 = vrot.slane %v741, 2
  %v743 = vadd.f32 %v741, %v742
  %v744 = vrot.slane %v743, 1
  %v745 = vadd.f32 %v743, %v744
  %v746 = vadd.f32 %v684, %v685
  %v747 = vadd.f32 %v746, %v686
  %v748 = vadd.f32 %v747, %v687
  %v749 = vrot.slane %v748, 4
  %v750 = vadd.f32 %v748, %v749
  %v751 = vrot.slane %v750, 2
  %v752 = vadd.f32 %v750, %v751
  %v753 = vrot.slane %v752, 1
  %v754 = vadd.f32 %v752, %v753
  %v755 = vadd.f32 %v688, %v689
  %v756 = vadd.f32 %v755, %v690
  %v757 = vadd.f32 %v756, %v691
  %v758 = vrot.slane %v757, 4
  %v759 = vadd.f32 %v757, %v758
  %v760 = vrot.slane %v759, 2
  %v761 = vadd.f32 %v759, %v760
  %v762 = vrot.slane %v761, 1
  %v763 = vadd.f32 %v761, %v762
  %v764 = vrsqrt.pop %v700
  %v765 = vmul.f32 %v764, %v700
  %v766 = vmul.f32 %v765, %v764
  %v767 = vmul.f32 0.5, %v766
  %v768 = vsub.f32 1.5, %v767
  %v769 = vmul.f32 %v764, %v768
  %v770 = vmul.f32 %v700, %v769
  %vm771 = vcmp.eq.f32.partialorder %v700, inf
  %v772 = vsel %vm771, %v700, %v770
  %vm773 = vcmp.eq.f32.partialorder %v700, 0.0
  %v774 = vand.u32 %v700, 2147483648
  %v775 = vsel %vm773, %v774, %v772
  %v776 = vrsqrt.pop %v709
  %v777 = vmul.f32 %v776, %v709
  %v778 = vmul.f32 %v777, %v776
  %v779 = vmul.f32 0.5, %v778
  %v780 = vsub.f32 1.5, %v779
  %v781 = vmul.f32 %v776, %v780
  %v782 = vmul.f32 %v709, %v781
  %vm783 = vcmp.eq.f32.partialorder %v709, inf
  %v784 = vsel %vm783, %v709, %v782
  %vm785 = vcmp.eq.f32.partialorder %v709, 0.0
  %v786 = vand.u32 %v709, 2147483648
  %v787 = vsel %vm785, %v786, %v784
  %v788 = vrsqrt.pop %v718
  %v789 = vmul.f32 %v788, %v718
  %v790 = vmul.f32 %v789, %v788
  %v791 = vmul.f32 0.5, %v790
  %v792 = vsub.f32 1.5, %v791
  %v793 = vmul.f32 %v788, %v792
  %v794 = vmul.f32 %v718, %v793
  %vm795 = vcmp.eq.f32.partialorder %v718, inf
  %v796 = vsel %vm795, %v718, %v794
  %vm797 = vcmp.eq.f32.partialorder %v718, 0.0
  %v798 = vand.u32 %v718, 2147483648
  %v799 = vsel %vm797, %v798, %v796
  %v800 = vrsqrt.pop %v727
  %v801 = vmul.f32 %v800, %v727
  %v802 = vmul.f32 %v801, %v800
  %v803 = vmul.f32 0.5, %v802
  %v804 = vsub.f32 1.5, %v803
  %v805 = vmul.f32 %v800, %v804
  %v806 = vmul.f32 %v727, %v805
  %vm807 = vcmp.eq.f32.partialorder %v727, inf
  %v808 = vsel %vm807, %v727, %v806
  %vm809 = vcmp.eq.f32.partialorder %v727, 0.0
  %v810 = vand.u32 %v727, 2147483648
  %v811 = vsel %vm809, %v810, %v808
  %v812 = vrsqrt.pop %v736
  %v813 = vmul.f32 %v812, %v736
  %v814 = vmul.f32 %v813, %v812
  %v815 = vmul.f32 0.5, %v814
  %v816 = vsub.f32 1.5, %v815
  %v817 = vmul.f32 %v812, %v816
  %v818 = vmul.f32 %v736, %v817
  %vm819 = vcmp.eq.f32.partialorder %v736, inf
  %v820 = vsel %vm819, %v736, %v818
  %vm821 = vcmp.eq.f32.partialorder %v736, 0.0
  %v822 = vand.u32 %v736, 2147483648
  %v823 = vsel %vm821, %v822, %v820
  %v824 = vrsqrt.pop %v745
  %v825 = vmul.f32 %v824, %v745
  %v826 = vmul.f32 %v825, %v824
  %v827 = vmul.f32 0.5, %v826
  %v828 = vsub.f32 1.5, %v827
  %v829 = vmul.f32 %v824, %v828
  %v830 = vmul.f32 %v745, %v829
  %vm831 = vcmp.eq.f32.partialorder %v745, inf
  %v832 = vsel %vm831, %v745, %v830
  %vm833 = vcmp.eq.f32.partialorder %v745, 0.0
  %v834 = vand.u32 %v745, 2147483648
  %v835 = vsel %vm833, %v834, %v832
  %v836 = vrsqrt.pop %v754
  %v837 = vmul.f32 %v836, %v754
  %v838 = vmul.f32 %v837, %v836
  %v839 = vmul.f32 0.5, %v838
  %v840 = vsub.f32 1.5, %v839
  %v841 = vmul.f32 %v836, %v840
  %v842 = vmul.f32 %v754, %v841
  %vm843 = vcmp.eq.f32.partialorder %v754, inf
  %v844 = vsel %vm843, %v754, %v842
  %vm845 = vcmp.eq.f32.partialorder %v754, 0.0
  %v846 = vand.u32 %v754, 2147483648
  %v847 = vsel %vm845, %v846, %v844
  %v848 = vrsqrt.pop %v763
  %v849 = vmul.f32 %v848, %v763
  %v850 = vmul.f32 %v849, %v848
  %v851 = vmul.f32 0.5, %v850
  %v852 = vsub.f32 1.5, %v851
  %v853 = vmul.f32 %v848, %v852
  %v854 = vmul.f32 %v763, %v853
  %vm855 = vcmp.eq.f32.partialorder %v763, inf
  %v856 = vsel %vm855, %v763, %v854
  %vm857 = vcmp.eq.f32.partialorder %v763, 0.0
  %v858 = vand.u32 %v763, 2147483648
  %v859 = vsel %vm857, %v858, %v856
  %v860 = vsub.f32 %v775, 12.0
  %v861 = vsub.f32 %v787, 12.0
  %v862 = vsub.f32 %v799, 12.0
  %v863 = vsub.f32 %v811, 12.0
  %v864 = vsub.f32 %v823, 12.0
  %v865 = vsub.f32 %v835, 12.0
  %v866 = vsub.f32 %v847, 12.0
  %v867 = vsub.f32 %v859, 12.0
  %vm876 = vcmask 1041409
  %v877 = vsel %vm876, %v861, %v860
  %vm878 = vcmask 1042434
  %v879 = vsel %vm878, %v862, %v877
  %vm880 = vcmask 1043459
  %v881 = vsel %vm880, %v863, %v879
  %vm882 = vcmask 1044484
  %v883 = vsel %vm882, %v864, %v881
  %vm884 = vcmask 1045509
  %v885 = vsel %vm884, %v865, %v883
  %vm886 = vcmask 1046534
  %v887 = vsel %vm886, %v866, %v885
  %vm888 = vcmask 1047559
  %v889 = vsel %vm888, %v867, %v887
  %891 = vst [vmem:[%s4] sm:$0xff] %v889
  // Predicated region
  $region18: #{_forward_neg.1} parent=0 // pred_check
    _
  $region19: #{_forward_neg.1} parent=0 // pred_check_branch
    %893 = sbr.rel (0) target = $region21
  $region20: #{_forward_neg.1} parent=0 // pred_region
    _
  $region21: #{_forward_neg.1} parent=0 // pred_fallthru
    _
  // Predicated region
  $region22: #{_forward_neg.1} parent=0 // pred_check
    _
  $region23: #{_forward_neg.1} parent=0 // pred_check_branch
    %895 = sbr.rel (0) target = $region25
  $region24: #{_forward_neg.1} parent=0 // pred_region
    _
  $region25: #{_forward_neg.1} parent=0 // pred_fallthru
    _

</llo_original>
